<compile_context>
chip_gen: v5e
topology: v5e:2x2
jax: 0.10.0
libtpu: 0.0.40
codegen_flags: <defaults>
</compile_context>

<pallas_src>
import math

import jax
import jax.numpy as jnp
from jax.experimental import pallas as pl
from jax.experimental.pallas import tpu as pltpu


def _round_up(a, b):
    return (a + b - 1) // b * b


# --------------------------- fc0: h = x @ W0t (E, L) ---------------------------

def _fc0_kernel(x_ref, w0t_ref, h_ref, acc_ref):
    # x_ref  : (1, TE)   input chunk along the E reduction axis
    # w0t_ref: (TE, L)   fc0 weight chunk, NN layout
    # h_ref  : (1, L)    output activation (written once at the last step)
    # acc_ref: (1, L) f32 accumulator scratch
    @pl.when(pl.program_id(0) == 0)
    def _():
        acc_ref[...] = jnp.zeros_like(acc_ref)

    acc_ref[...] += jax.lax.dot_general(
        x_ref[...], w0t_ref[...],
        dimension_numbers=(((1,), (0,)), ((), ())),
        preferred_element_type=jnp.float32)

    @pl.when(pl.program_id(0) == pl.num_programs(0) - 1)
    def _():
        # h is emitted directly in the fc1 weight dtype -> no per-tile cast later
        h_ref[...] = acc_ref[...].astype(h_ref.dtype)


def _fc0(x_vec, w0t, h_dtype, *, block_e=1024):
    E, L = w0t.shape
    te = block_e if E > block_e else _round_up(E, 128)
    e_pad = _round_up(E, te)
    if e_pad != E:
        # zero padding along the reduction axis contributes nothing
        x_vec = jnp.pad(x_vec, ((0, 0), (0, e_pad - E)))
        w0t = jnp.pad(w0t, ((0, e_pad - E), (0, 0)))

    return pl.pallas_call(
        _fc0_kernel,
        out_shape=jax.ShapeDtypeStruct((1, L), h_dtype),
        grid_spec=pltpu.PrefetchScalarGridSpec(
            num_scalar_prefetch=0,
            grid=(e_pad // te,),
            in_specs=[
                pl.BlockSpec((1, te), lambda k: (0, k)),   # x chunk
                pl.BlockSpec((te, L), lambda k: (k, 0)),   # W0t chunk (streamed)
            ],
            out_specs=pl.BlockSpec((1, L), lambda k: (0, 0)),
            scratch_shapes=[pltpu.VMEM((1, L), jnp.float32)],
        ),
        compiler_params=pltpu.CompilerParams(
            # accumulator carries across the reduction axis -> sequential
            dimension_semantics=("arbitrary",),
        ),
    )(x_vec, w0t)


# --------------------------- fc1: y = h @ W1t (L, O) ---------------------------

def _fc1_kernel(h_ref, w1t_ref, o_ref):
    # h_ref  : (1, L)    activation (constant block index; tiny)
    # w1t_ref: (L, TO)   fc1 weight tile, NN layout, lane-dense along TO
    # o_ref  : (1, TO)   output tile (lane-dense)
    o_ref[...] = jax.lax.dot_general(
        h_ref[...], w1t_ref[...],
        dimension_numbers=(((1,), (0,)), ((), ())),
        preferred_element_type=jnp.float32).astype(o_ref.dtype)


def _fc1(h, w1t, out_dtype, *, block_out=2048,
         w1_tile_budget_bytes=32 * 1024 * 1024):
    L, O = w1t.shape
    itemsize = w1t.dtype.itemsize

    to = block_out if block_out % 128 == 0 else 2048
    # Shrink TO so a double-buffered W1 tile fits a v7x-safe VMEM budget.
    while to > 128 and 2 * to * L * itemsize > w1_tile_budget_bytes:
        to //= 2
    if O <= to:
        to = _round_up(O, 128)
        o_pad = to
    else:
        o_pad = _round_up(O, to)
    if o_pad != O:
        w1t = jnp.pad(w1t, ((0, 0), (0, o_pad - O)))

    vmem_need = (2 * to * L * itemsize                         # W1 tile, 2 buffers
                 + 2 * L * h.dtype.itemsize                    # h, 2 buffers
                 + 2 * to * jnp.dtype(out_dtype).itemsize      # out tile, 2 buffers
                 + (4 << 20))                                  # margin
    vmem_limit = min(max(vmem_need, 32 * 1024 * 1024), 48 * 1024 * 1024)

    out = pl.pallas_call(
        _fc1_kernel,
        out_shape=jax.ShapeDtypeStruct((1, o_pad), out_dtype),
        grid_spec=pltpu.PrefetchScalarGridSpec(
            num_scalar_prefetch=0,
            grid=(o_pad // to,),
            in_specs=[
                pl.BlockSpec((1, L), lambda j: (0, 0)),    # h: constant index
                pl.BlockSpec((L, to), lambda j: (0, j)),   # W1t: streamed, lane-dense
            ],
            out_specs=pl.BlockSpec((1, to), lambda j: (0, j)),
        ),
        compiler_params=pltpu.CompilerParams(
            # no carry across output tiles -> shard across TCs on v7x
            dimension_semantics=("parallel",),
            vmem_limit_bytes=vmem_limit,
        ),
    )(h, w1t)
    return out[0, :O]


# ------------------------------- public wrapper -------------------------------

def prepare_weights(w0, w1):
    """One-time weight prep: nn.Linear layout -> NN (non-transposed) layout.

    w0: (low_rank_dim, embed_dim)  fc0.weight  -> w0t (embed_dim, low_rank_dim)
    w1: (out_part,     low_rank_dim) fc1.weight -> w1t (low_rank_dim, out_part)
    (Store weights in bf16 here for ~2x on this HBM-bound GEMV; accumulation
     stays f32 inside the kernels.)
    """
    return jnp.asarray(w0).T, jnp.asarray(w1).T


def parallel_sp_forward(x, w0t, w1t, *, block_out=2048, block_e=1024):
    """ParallelSP.forward for one rank.

    x  : any shape with exactly embed_dim elements (matches x.view(embed_dim))
    w0t: (embed_dim, low_rank_dim)   pre-transposed fc0.weight
    w1t: (low_rank_dim, out_part)    pre-transposed fc1.weight column partition
    returns: (out_part,)
    """
    E, L = w0t.shape
    L2, O = w1t.shape
    assert L == L2
    x_vec = x.reshape(1, E).astype(w0t.dtype)

    h = _fc0(x_vec, w0t, w1t.dtype, block_e=block_e)          # (1, L)
    y = _fc1(h, w1t, x.dtype, block_out=block_out)            # (O,)
    return y


def _reference(x, w0, w1):
    h = jnp.dot(x.reshape(-1).astype(w0.dtype), w0.T)
    return jnp.dot(h.astype(w1.dtype), w1.T)


if __name__ == "__main__":
    key = jax.random.PRNGKey(0)

    # small, tile-aligned shapes consistent with the module
    embed_dim, low_rank_dim, out_dim = 256, 128, 512
    world_size = 1                      # single-rank demo of the column-parallel fc1
    out_part = out_dim // world_size
    K = 64 // world_size                # K is unused in forward (top-K happens downstream)

    k1, k2, k3 = jax.random.split(key, 3)
    x = jax.random.normal(k1, (1, 1, embed_dim), dtype=jnp.float32)
    w0 = jax.random.normal(k2, (low_rank_dim, embed_dim), dtype=jnp.float32) \
        * (1.0 / math.sqrt(embed_dim))
    w1 = jax.random.normal(k3, (out_part, low_rank_dim), dtype=jnp.float32) \
        * (1.0 / math.sqrt(low_rank_dim))

    # ---- f32 path, aligned shapes ----
    w0t, w1t = prepare_weights(w0, w1)
    y = jax.block_until_ready(parallel_sp_forward(x, w0t, w1t))
    ref = _reference(x, w0, w1)
    assert y.shape == (out_part,)
    assert jnp.allclose(y, ref, atol=2e-3, rtol=2e-3), \
        f"f32 mismatch: {jnp.max(jnp.abs(y - ref))}"

    # ---- non-128-aligned embed_dim / out_dim exercise the padding paths ----
    e2, o2 = 200, 333
    xa = jax.random.normal(k1, (e2,), dtype=jnp.float32)
    w0a = jax.random.normal(k2, (low_rank_dim, e2), dtype=jnp.float32) \
        * (1.0 / math.sqrt(e2))
    w1a = jax.random.normal(k3, (o2, low_rank_dim), dtype=jnp.float32) \
        * (1.0 / math.sqrt(low_rank_dim))
    w0ta, w1ta = prepare_weights(w0a, w1a)
    ya = jax.block_until_ready(parallel_sp_forward(xa, w0ta, w1ta))
    refa = _reference(xa, w0a, w1a)
    assert ya.shape == (o2,)
    assert jnp.allclose(ya, refa, atol=2e-3, rtol=2e-3), \
        f"padded mismatch: {jnp.max(jnp.abs(ya - refa))}"

    # ---- bf16 weight streaming (recommended for this HBM-bound GEMV) ----
    xb = x.astype(jnp.bfloat16)
    w0tb, w1tb = prepare_weights(w0.astype(jnp.bfloat16), w1.astype(jnp.bfloat16))
    yb = jax.block_until_ready(parallel_sp_forward(xb, w0tb, w1tb))
    assert yb.shape == (out_part,)
    assert jnp.allclose(yb.astype(jnp.float32), ref, atol=1e-1, rtol=1e-1), \
        f"bf16 mismatch: {jnp.max(jnp.abs(yb.astype(jnp.float32) - ref))}"

    print("KERNEL_OK")
</pallas_src>

<mosaic_0001>
module attributes {stable_mosaic.version = 11 : i64} {
  func.func @_fc0_kernel(%arg0: i32, %arg1: memref<1x256xf32, #tpu.memory_space<vmem>>, %arg2: memref<256x128xf32, #tpu.memory_space<vmem>>, %arg3: memref<1x128xf32, #tpu.memory_space<vmem>>, %arg4: memref<1x128xf32, #tpu.memory_space<vmem>>) attributes {dimension_semantics = [#tpu.dimension_semantics<arbitrary>], iteration_bounds = array<i64: 1>, scalar_prefetch = 0 : i64, scratch_operands = 1 : i64, tpu.core_type = #tpu.core_type<tc>, window_params = [{transform_indices = @transform_0, window_bounds = array<i64: 1, 256>}, {transform_indices = @transform_1, window_bounds = array<i64: 256, 128>}, {pipeline_mode = #tpu.pipeline_mode<synchronous>, transform_indices = @transform_2, window_bounds = array<i64: 1, 128>}]} {
    %c0_i32 = arith.constant 0 : i32
    %0 = arith.cmpi eq, %arg0, %c0_i32 : i32
    %1 = arith.extui %0 : i1 to i32
    %c0_i32_0 = arith.constant 0 : i32
    %2 = arith.cmpi ne, %1, %c0_i32_0 : i32
    scf.if %2 {
      %cst_10 = arith.constant 0.000000e+00 : f32
      %12 = vector.broadcast %cst_10 : f32 to vector<1x128xf32>
      %c0_11 = arith.constant 0 : index
      %c0_12 = arith.constant 0 : index
      %13 = vector.load %arg4[%c0_11, %c0_12] : memref<1x128xf32, #tpu.memory_space<vmem>>, vector<1x128xf32>
      tpu.vector_store %arg4[%c0_11, %c0_12], %12 {strides = array<i32>} : memref<1x128xf32, #tpu.memory_space<vmem>>, vector<1x128xf32>,
    } else {
    }
    %c0 = arith.constant 0 : index
    %c0_1 = arith.constant 0 : index
    %3 = vector.load %arg4[%c0, %c0_1] : memref<1x128xf32, #tpu.memory_space<vmem>>, vector<1x128xf32>
    %c0_2 = arith.constant 0 : index
    %c0_3 = arith.constant 0 : index
    %4 = vector.load %arg1[%c0_2, %c0_3] : memref<1x256xf32, #tpu.memory_space<vmem>>, vector<1x256xf32>
    %c0_4 = arith.constant 0 : index
    %c0_5 = arith.constant 0 : index
    %5 = vector.load %arg2[%c0_4, %c0_5] : memref<256x128xf32, #tpu.memory_space<vmem>>, vector<256x128xf32>
    %cst = arith.constant dense<0.000000e+00> : vector<1x128xf32>
    %6 = tpu.matmul %4, %5, %cst {dimension_numbers = #tpu.dot_dimension_numbers<[1], [0], [0], [1], [0, 0, 1, 1], [], []>} : vector<1x256xf32>, vector<256x128xf32>, vector<1x128xf32> -> vector<1x128xf32>
    %7 = arith.addf %3, %6 : vector<1x128xf32>
    %c0_6 = arith.constant 0 : index
    %c0_7 = arith.constant 0 : index
    %8 = vector.load %arg4[%c0_6, %c0_7] : memref<1x128xf32, #tpu.memory_space<vmem>>, vector<1x128xf32>
    tpu.vector_store %arg4[%c0_6, %c0_7], %7 {strides = array<i32>} : memref<1x128xf32, #tpu.memory_space<vmem>>, vector<1x128xf32>,
    %c0_i32_8 = arith.constant 0 : i32
    %9 = arith.cmpi eq, %arg0, %c0_i32_8 : i32
    %10 = arith.extui %9 : i1 to i32
    %c0_i32_9 = arith.constant 0 : i32
    %11 = arith.cmpi ne, %10, %c0_i32_9 : i32
    scf.if %11 {
      %c0_10 = arith.constant 0 : index
      %c0_11 = arith.constant 0 : index
      %12 = vector.load %arg4[%c0_10, %c0_11] : memref<1x128xf32, #tpu.memory_space<vmem>>, vector<1x128xf32>
      %c0_12 = arith.constant 0 : index
      %c0_13 = arith.constant 0 : index
      %13 = vector.load %arg3[%c0_12, %c0_13] : memref<1x128xf32, #tpu.memory_space<vmem>>, vector<1x128xf32>
      tpu.vector_store %arg3[%c0_12, %c0_13], %12 {strides = array<i32>} : memref<1x128xf32, #tpu.memory_space<vmem>>, vector<1x128xf32>,
    } else {
    }
    return
  }
  func.func @transform_0(%arg0: i32) -> (i32, i32) {
    %c0_i32 = arith.constant 0 : i32
    %c0_i32_0 = arith.constant 0 : i32
    return %c0_i32, %arg0 : i32, i32
  }
  func.func @transform_1(%arg0: i32) -> (i32, i32) {
    %c0_i32 = arith.constant 0 : i32
    %c0_i32_0 = arith.constant 0 : i32
    return %arg0, %c0_i32 : i32, i32
  }
  func.func @transform_2(%arg0: i32) -> (i32, i32) {
    %c0_i32 = arith.constant 0 : i32
    %c0_i32_0 = arith.constant 0 : i32
    %c0_i32_1 = arith.constant 0 : i32
    return %c0_i32, %c0_i32_0 : i32, i32
  }
}

</mosaic_0001>

<llo_original>
// kernel: tpu_custom_call.1
$region0: #{tpu_custom_call.1}
  #allocation0 [shape = 'u32[]', space=smem, size = 0x4, offset = 0x4, fixed_abs, tag = 'smem constant byte address 0x4 - core index']
  #allocation1 [shape = 'u32[72,128]{1,0:T(1,128)}', space=vmem, size = 0x9000, scoped, tag = 'internal scratch']
  #allocation2 [shape = 'f32[1,128]{1,0:T(1,128)}', space=vmem, size = 0x200, scoped, tag = 'scratch operand']
  %s0 = inlined_call_operand.hbm [shape: f32[1,256], index: 0, kind: input, shape index: {}]
  %s1 = inlined_call_operand.hbm [shape: f32[256,128], index: 1, kind: input, shape index: {}]
  %s2 = inlined_call_operand.hbm [shape: f32[1,128], index: 2, kind: output, shape index: {}]
  %s3 = sld [smem:[#allocation0]]
  $region34: #{tpu_custom_call.1} parent=0
    _
  %s5 = ssub.s32 1, %s3
  %s6 = scalar_select 0, %s5, %s3
  $region1: #{tpu_custom_call.1} parent=0
    #allocation3 [shape = 'u8[1024]{0}', space=vmem, size = 0x400, scoped, tag = 'input window, operand 0, single buffered']
    #allocation4 [shape = 's32[1]{0}', space=sflag, size = 0x4, scoped, tag = 'scoped memory for tpu_custom_call.1']
    #allocation5 [shape = 's32[1]{0}', space=sflag, size = 0x4, scoped, tag = 'scoped memory for tpu_custom_call.1']
    #allocation6 [shape = 'u8[131072]{0}', space=vmem, size = 0x20000, scoped, tag = 'input window, operand 1, single buffered']
    #allocation7 [shape = 's32[1]{0}', space=sflag, size = 0x4, scoped, tag = 'scoped memory for tpu_custom_call.1']
    #allocation8 [shape = 'u8[512]{0}', space=vmem, size = 0x400, scoped, tag = 'output window, operand 0, single buffered']
    %7 = vsyncpa [#allocation4], 0
    %8 = vsyncpa [#allocation7], 0
    %9 = vsyncpa [#allocation5], 0
    // Predicated region
    $region2: #{tpu_custom_call.1} parent=1 // pred_check
      _
    $region3: #{tpu_custom_call.1} parent=1 // pred_check_branch
      %11 = sbr.rel (0) target = $region5
    $region4: #{tpu_custom_call.1} parent=1 // pred_region
      %13 = vsyncadd [#allocation4], 0
      %s15 = sshll.u32 %s0, 4
      %s16 = int_to_ptr.hbm [resolvable:$true] %s15
      %s17 = sshll.u32 [#allocation3], 4
      %s18 = int_to_ptr.vmem [resolvable:$true] %s17
      %20 = dma.hbm_to_vmem [thread:$0]  %s16, 32, %s18, [#allocation4]
    $region5: #{tpu_custom_call.1} parent=1 // pred_fallthru
      _
    // Predicated region
    $region6: #{tpu_custom_call.1} parent=1 // pred_check
      _
    $region7: #{tpu_custom_call.1} parent=1 // pred_check_branch
      %22 = sbr.rel (0) target = $region9
    $region8: #{tpu_custom_call.1} parent=1 // pred_region
      %24 = vsyncadd [#allocation7], 0
      %s25 = sshll.u32 %s1, 4
      %s26 = int_to_ptr.hbm [resolvable:$true] %s25
      %s27 = sshll.u32 [#allocation6], 4
      %s28 = int_to_ptr.vmem [resolvable:$true] %s27
      %33 = dma.hbm_to_vmem [thread:$0]  %s26, 4096, %s28, [#allocation7], 128, 128, 8
    $region9: #{tpu_custom_call.1} parent=1 // pred_fallthru
      _
    // Predicated region
    $region10: #{tpu_custom_call.1} parent=1 // pred_check
      _
    $region11: #{tpu_custom_call.1} parent=1 // pred_check_branch
      %35 = sbr.rel (0) target = $region13
    $region12: #{tpu_custom_call.1} parent=1 // pred_region
      %37 = dma.done [#allocation4], 32
    $region13: #{tpu_custom_call.1} parent=1 // pred_fallthru
      _
    // Predicated region
    $region14: #{tpu_custom_call.1} parent=1 // pred_check
      _
    $region15: #{tpu_custom_call.1} parent=1 // pred_check_branch
      %39 = sbr.rel (0) target = $region17
    $region16: #{tpu_custom_call.1} parent=1 // pred_region
      %41 = dma.done [#allocation7], 4096
    $region17: #{tpu_custom_call.1} parent=1 // pred_fallthru
      _
    %p42 = scmp.eq.s32.totalorder 0, 0
    // Predicated region
    $region18: #{tpu_custom_call.1} parent=1 // pred_check
      %p43 = pneg %p42
    $region19: #{tpu_custom_call.1} parent=1 // pred_check_branch
      %45 = sbr.rel (%p43) target = $region21
    $region20: #{tpu_custom_call.1} parent=1 // pred_region
      %46 = vst [vmem:[#allocation2] sm:$0x1] 0.0
    $region21: #{tpu_custom_call.1} parent=1 // pred_fallthru
      _
    %v47 = vld [vmem:[#allocation2] sm:$0x1]
    %v48 = vld [vmem:[#allocation3] sm:$0x3]
    %v49 = vld [vmem:[#allocation6] sm:$0xff]
    %v50 = vld [vmem:[#allocation6 + $0x8] sm:$0xff]
    %v51 = vld [vmem:[#allocation6 + $0x10] sm:$0xff]
    %v52 = vld [vmem:[#allocation6 + $0x18] sm:$0xff]
    %v53 = vld [vmem:[#allocation6 + $0x20] sm:$0xff]
    %v54 = vld [vmem:[#allocation6 + $0x28] sm:$0xff]
    %v55 = vld [vmem:[#allocation6 + $0x30] sm:$0xff]
    %v56 = vld [vmem:[#allocation6 + $0x38] sm:$0xff]
    %v57 = vld [vmem:[#allocation6 + $0x40] sm:$0xff]
    %v58 = vld [vmem:[#allocation6 + $0x48] sm:$0xff]
    %v59 = vld [vmem:[#allocation6 + $0x50] sm:$0xff]
    %v60 = vld [vmem:[#allocation6 + $0x58] sm:$0xff]
    %v61 = vld [vmem:[#allocation6 + $0x60] sm:$0xff]
    %v62 = vld [vmem:[#allocation6 + $0x68] sm:$0xff]
    %v63 = vld [vmem:[#allocation6 + $0x70] sm:$0xff]
    %v64 = vld [vmem:[#allocation6 + $0x78] sm:$0xff]
    %v65 = vld [vmem:[#allocation6 + $0x80] sm:$0xff]
    %v66 = vld [vmem:[#allocation6 + $0x88] sm:$0xff]
    %v67 = vld [vmem:[#allocation6 + $0x90] sm:$0xff]
    %v68 = vld [vmem:[#allocation6 + $0x98] sm:$0xff]
    %v69 = vld [vmem:[#allocation6 + $0xa0] sm:$0xff]
    %v70 = vld [vmem:[#allocation6 + $0xa8] sm:$0xff]
    %v71 = vld [vmem:[#allocation6 + $0xb0] sm:$0xff]
    %v72 = vld [vmem:[#allocation6 + $0xb8] sm:$0xff]
    %v73 = vld [vmem:[#allocation6 + $0xc0] sm:$0xff]
    %v74 = vld [vmem:[#allocation6 + $0xc8] sm:$0xff]
    %v75 = vld [vmem:[#allocation6 + $0xd0] sm:$0xff]
    %v76 = vld [vmem:[#allocation6 + $0xd8] sm:$0xff]
    %v77 = vld [vmem:[#allocation6 + $0xe0] sm:$0xff]
    %v78 = vld [vmem:[#allocation6 + $0xe8] sm:$0xff]
    %v79 = vld [vmem:[#allocation6 + $0xf0] sm:$0xff]
    %v80 = vld [vmem:[#allocation6 + $0xf8] sm:$0xff]
    %v82 = vperm.slane %v48, 0
    %v83 = vperm.slane %v48, 1
    %86 = vmatpush.msra.mxu0 %v64
    %87 = vmatpush.msra.mxu0 %v63
    %88 = vmatpush.msra.mxu0 %v62
    %89 = vmatpush.msra.mxu0 %v61
    %90 = vmatpush.msra.mxu0 %v60
    %91 = vmatpush.msra.mxu0 %v59
    %92 = vmatpush.msra.mxu0 %v58
    %93 = vmatpush.msra.mxu0 %v57
    %94 = vmatpush.msra.mxu0 %v56
    %95 = vmatpush.msra.mxu0 %v55
    %96 = vmatpush.msra.mxu0 %v54
    %97 = vmatpush.msra.mxu0 %v53
    %98 = vmatpush.msra.mxu0 %v52
    %99 = vmatpush.msra.mxu0 %v51
    %100 = vmatpush.msra.mxu0 %v50
    %101 = vmatpush.msra.mxu0 %v49
    %102 = vmatmul.f32.gmra.mxu0 %v82
    %v103 = vpop.f32.mrf.mxu0
    %v104 = vadd.f32 0.0, %v103
    %105 = vdwg.mxu0
    %106 = vmatpush.msra.mxu0 %v80
    %107 = vmatpush.msra.mxu0 %v79
    %108 = vmatpush.msra.mxu0 %v78
    %109 = vmatpush.msra.mxu0 %v77
    %110 = vmatpush.msra.mxu0 %v76
    %111 = vmatpush.msra.mxu0 %v75
    %112 = vmatpush.msra.mxu0 %v74
    %113 = vmatpush.msra.mxu0 %v73
    %114 = vmatpush.msra.mxu0 %v72
    %115 = vmatpush.msra.mxu0 %v71
    %116 = vmatpush.msra.mxu0 %v70
    %117 = vmatpush.msra.mxu0 %v69
    %118 = vmatpush.msra.mxu0 %v68
    %119 = vmatpush.msra.mxu0 %v67
    %120 = vmatpush.msra.mxu0 %v66
    %121 = vmatpush.msra.mxu0 %v65
    %122 = vmatmul.f32.gmra.mxu0 %v83
    %v123 = vpop.f32.mrf.mxu0
    %v124 = vadd.f32 %v104, %v123
    %125 = vdwg.mxu0
    %v126 = vadd.f32 %v47, %v124
    %127 = vst [vmem:[#allocation2] sm:$0x1] %v126
    // Predicated region
    $region22: #{tpu_custom_call.1} parent=1 // pred_check
      %p128 = pneg %p42
    $region23: #{tpu_custom_call.1} parent=1 // pred_check_branch
      %130 = sbr.rel (%p128) target = $region25
    $region24: #{tpu_custom_call.1} parent=1 // pred_region
      %v131 = vld [vmem:[#allocation2] sm:$0x1]
      %132 = vst [vmem:[#allocation8] sm:$0x1] %v131
    $region25: #{tpu_custom_call.1} parent=1 // pred_fallthru
      _
    // Predicated region
    $region26: #{tpu_custom_call.1} parent=1 // pred_check
      _
    $region27: #{tpu_custom_call.1} parent=1 // pred_check_branch
      %134 = sbr.rel (0) target = $region29
    $region28: #{tpu_custom_call.1} parent=1 // pred_region
      %136 = vsyncadd [#allocation5], 0
      %s138 = sshll.u32 [#allocation8], 4
      %s139 = int_to_ptr.vmem [resolvable:$true] %s138
      %s140 = sshll.u32 %s2, 4
      %s141 = int_to_ptr.hbm [resolvable:$true] %s140
      %143 = dma.vmem_to_hbm [thread:$0]  %s139, 16, %s141, [#allocation5]
    $region29: #{tpu_custom_call.1} parent=1 // pred_fallthru
      _
    // Predicated region
    $region30: #{tpu_custom_call.1} parent=1 // pred_check
      _
    $region31: #{tpu_custom_call.1} parent=1 // pred_check_branch
      %145 = sbr.rel (0) target = $region33
    $region32: #{tpu_custom_call.1} parent=1 // pred_region
      %147 = dma.done [#allocation5], 16
    $region33: #{tpu_custom_call.1} parent=1 // pred_fallthru
      _
    %148 = vsyncpa [#allocation4], 1
    %149 = vsyncpa [#allocation7], 1
    %150 = vsyncpa [#allocation5], 1

</llo_original>
